<compile_context>
chip_gen: v6e
topology: v6e:2x2x1
jax: 0.10.0
libtpu: 0.0.40
codegen_flags: <defaults>
</compile_context>

<pallas_src>
import functools

import jax
import jax.numpy as jnp
from jax.experimental import pallas as pl
from jax.experimental.pallas import tpu as pltpu


def _round_up(x: int, m: int) -> int:
    return ((x + m - 1) // m) * m


def _triplet_kernel(a_ref, p_ref, n_ref, o_ref, pd_acc, nd_acc, *, margin):
    """Grid = (batch_tiles, feat_tiles); feat axis is the reduction axis."""
    j = pl.program_id(1)

    @pl.when(j == 0)
    def _():
        pd_acc[...] = jnp.zeros_like(pd_acc)
        nd_acc[...] = jnp.zeros_like(nd_acc)

    # Hot loop: pure VPU work (sub + fma) on the (block_b, block_d) tile.
    a = a_ref[...].astype(jnp.float32)
    dp = a - p_ref[...].astype(jnp.float32)
    dn = a - n_ref[...].astype(jnp.float32)
    pd_acc[...] += dp * dp
    nd_acc[...] += dn * dn

    @pl.when(j == pl.num_programs(1) - 1)
    def _():
        # Epilogue (once per output tile): cross-lane reduce, sqrt, loss.
        pos_dist = jnp.sqrt(jnp.sum(pd_acc[...], axis=-1, keepdims=True))
        neg_dist = jnp.sqrt(jnp.sum(nd_acc[...], axis=-1, keepdims=True))
        if margin is None:
            loss = jnp.log1p(jnp.exp(pos_dist - neg_dist))      # SoftTripletLoss
        else:
            loss = jnp.maximum(margin + pos_dist - neg_dist, 0.0)
        o_ref[...] = loss.astype(o_ref.dtype)


def triplet_loss(anchor, positive, negative, *, margin, reduction="mean",
                 block_b=128, block_d=512):
    """TripletLoss forward. anchor/positive/negative: (B, D). Returns scalar or (B,)."""
    assert anchor.shape == positive.shape == negative.shape
    assert anchor.ndim == 2
    assert reduction in ("mean", "sum", "none")
    assert margin is None or margin > 0

    B, D = anchor.shape
    bb = min(block_b, _round_up(B, 8))      # sublane-aligned batch tile
    bd = min(block_d, _round_up(D, 128))    # lane-dense feature tile
    Bp = _round_up(B, bb)
    Dp = _round_up(D, bd)

    def pad(x):
        if (Bp, Dp) == (B, D):
            return x
        return jnp.pad(x, ((0, Bp - B), (0, Dp - D)))

    a, p, n = pad(anchor), pad(positive), pad(negative)

    grid = (Bp // bb, Dp // bd)
    in_spec = pl.BlockSpec((bb, bd), lambda i, j: (i, j))
    out_spec = pl.BlockSpec((bb, 1), lambda i, j: (i, 0))   # resident across feat axis

    kernel = functools.partial(_triplet_kernel, margin=margin)

    per_row = pl.pallas_call(
        kernel,
        out_shape=jax.ShapeDtypeStruct((Bp, 1), jnp.float32),
        grid_spec=pltpu.PrefetchScalarGridSpec(
            num_scalar_prefetch=0,
            grid=grid,
            in_specs=[in_spec, in_spec, in_spec],
            out_specs=out_spec,
            scratch_shapes=[pltpu.VMEM((bb, bd), jnp.float32),
                            pltpu.VMEM((bb, bd), jnp.float32)],
        ),
        compiler_params=pltpu.CompilerParams(
            dimension_semantics=("parallel", "arbitrary")),
    )(a, p, n)

    loss = per_row[:B, 0]                 # drop padded rows, flatten to (B,)
    if reduction == "mean":
        return jnp.mean(loss)
    if reduction == "sum":
        return jnp.sum(loss)
    return loss
    # TODO(synk): need_logs / self.last_logs bookkeeping is host-side Python
    # state; compute it from `loss`, pos/neg dists outside the kernel if needed.


def triplet_loss_ref(anchor, positive, negative, *, margin, reduction="mean"):
    """Pure-JAX reference mirroring the PyTorch forward."""
    pd = jnp.sqrt(jnp.sum((anchor - positive) ** 2, axis=-1))
    nd = jnp.sqrt(jnp.sum((anchor - negative) ** 2, axis=-1))
    if margin is None:
        loss = jnp.log1p(jnp.exp(pd - nd))
    else:
        loss = jnp.maximum(margin + pd - nd, 0.0)
    if reduction == "mean":
        return jnp.mean(loss)
    if reduction == "sum":
        return jnp.sum(loss)
    return loss


if __name__ == "__main__":
    key = jax.random.PRNGKey(0)

    # Small shapes consistent with the module: (batch, feat) triplets.
    B, D = 8, 128
    ka, kp, kn = jax.random.split(key, 3)
    anchor = jax.random.normal(ka, (B, D), dtype=jnp.float32)
    positive = jax.random.normal(kp, (B, D), dtype=jnp.float32)
    negative = jax.random.normal(kn, (B, D), dtype=jnp.float32)

    # 1) Classical TripletMarginLoss path (margin + mean reduction).
    out = triplet_loss(anchor, positive, negative, margin=0.5, reduction="mean")
    out = jax.block_until_ready(out)
    ref = triplet_loss_ref(anchor, positive, negative, margin=0.5, reduction="mean")
    assert out.shape == ()
    assert jnp.allclose(out, ref, rtol=1e-5, atol=1e-5), (out, ref)

    # 2) SoftTripletLoss path (margin=None), 'none' reduction.
    out_soft = triplet_loss(anchor, positive, negative, margin=None, reduction="none")
    out_soft = jax.block_until_ready(out_soft)
    ref_soft = triplet_loss_ref(anchor, positive, negative, margin=None, reduction="none")
    assert out_soft.shape == (B,)
    assert jnp.allclose(out_soft, ref_soft, rtol=1e-5, atol=1e-5), (out_soft, ref_soft)

    # 3) Unaligned shape to exercise the padding / remainder handling.
    B2, D2 = 5, 40
    a2 = jax.random.normal(ka, (B2, D2), dtype=jnp.float32)
    p2 = jax.random.normal(kp, (B2, D2), dtype=jnp.float32)
    n2 = jax.random.normal(kn, (B2, D2), dtype=jnp.float32)
    out2 = jax.block_until_ready(
        triplet_loss(a2, p2, n2, margin=1.0, reduction="sum"))
    ref2 = triplet_loss_ref(a2, p2, n2, margin=1.0, reduction="sum")
    assert jnp.allclose(out2, ref2, rtol=1e-5, atol=1e-5), (out2, ref2)

    print("KERNEL_OK")
</pallas_src>

<mosaic_0001>
module attributes {stable_mosaic.version = 11 : i64} {
  func.func @_triplet_kernel(%arg0: i32, %arg1: i32, %arg2: memref<8x128xf32, #tpu.memory_space<vmem>>, %arg3: memref<8x128xf32, #tpu.memory_space<vmem>>, %arg4: memref<8x128xf32, #tpu.memory_space<vmem>>, %arg5: memref<8x1xf32, #tpu.memory_space<vmem>>, %arg6: memref<8x128xf32, #tpu.memory_space<vmem>>, %arg7: memref<8x128xf32, #tpu.memory_space<vmem>>) attributes {dimension_semantics = [#tpu.dimension_semantics<parallel>, #tpu.dimension_semantics<arbitrary>], iteration_bounds = array<i64: 1, 1>, scalar_prefetch = 0 : i64, scratch_operands = 2 : i64, tpu.core_type = #tpu.core_type<tc>, window_params = [{transform_indices = @transform_0, window_bounds = array<i64: 8, 128>}, {transform_indices = @transform_1, window_bounds = array<i64: 8, 128>}, {transform_indices = @transform_2, window_bounds = array<i64: 8, 128>}, {transform_indices = @transform_3, window_bounds = array<i64: 8, 1>}]} {
    %c0_i32 = arith.constant 0 : i32
    %0 = arith.cmpi eq, %arg1, %c0_i32 : i32
    %1 = arith.extui %0 : i1 to i32
    %c0_i32_0 = arith.constant 0 : i32
    %2 = arith.cmpi ne, %1, %c0_i32_0 : i32
    scf.if %2 {
      %cst = arith.constant 0.000000e+00 : f32
      %19 = vector.broadcast %cst : f32 to vector<8x128xf32>
      %c0_16 = arith.constant 0 : index
      %c0_17 = arith.constant 0 : index
      %20 = vector.load %arg6[%c0_16, %c0_17] : memref<8x128xf32, #tpu.memory_space<vmem>>, vector<8x128xf32>
      tpu.vector_store %arg6[%c0_16, %c0_17], %19 {strides = array<i32>} : memref<8x128xf32, #tpu.memory_space<vmem>>, vector<8x128xf32>,
      %cst_18 = arith.constant 0.000000e+00 : f32
      %21 = vector.broadcast %cst_18 : f32 to vector<8x128xf32>
      %c0_19 = arith.constant 0 : index
      %c0_20 = arith.constant 0 : index
      %22 = vector.load %arg7[%c0_19, %c0_20] : memref<8x128xf32, #tpu.memory_space<vmem>>, vector<8x128xf32>
      tpu.vector_store %arg7[%c0_19, %c0_20], %21 {strides = array<i32>} : memref<8x128xf32, #tpu.memory_space<vmem>>, vector<8x128xf32>,
    } else {
    }
    %c0 = arith.constant 0 : index
    %c0_1 = arith.constant 0 : index
    %3 = vector.load %arg2[%c0, %c0_1] : memref<8x128xf32, #tpu.memory_space<vmem>>, vector<8x128xf32>
    %c0_2 = arith.constant 0 : index
    %c0_3 = arith.constant 0 : index
    %4 = vector.load %arg3[%c0_2, %c0_3] : memref<8x128xf32, #tpu.memory_space<vmem>>, vector<8x128xf32>
    %5 = arith.subf %3, %4 : vector<8x128xf32>
    %c0_4 = arith.constant 0 : index
    %c0_5 = arith.constant 0 : index
    %6 = vector.load %arg4[%c0_4, %c0_5] : memref<8x128xf32, #tpu.memory_space<vmem>>, vector<8x128xf32>
    %7 = arith.subf %3, %6 : vector<8x128xf32>
    %c0_6 = arith.constant 0 : index
    %c0_7 = arith.constant 0 : index
    %8 = vector.load %arg6[%c0_6, %c0_7] : memref<8x128xf32, #tpu.memory_space<vmem>>, vector<8x128xf32>
    %9 = arith.mulf %5, %5 : vector<8x128xf32>
    %10 = arith.addf %8, %9 : vector<8x128xf32>
    %c0_8 = arith.constant 0 : index
    %c0_9 = arith.constant 0 : index
    %11 = vector.load %arg6[%c0_8, %c0_9] : memref<8x128xf32, #tpu.memory_space<vmem>>, vector<8x128xf32>
    tpu.vector_store %arg6[%c0_8, %c0_9], %10 {strides = array<i32>} : memref<8x128xf32, #tpu.memory_space<vmem>>, vector<8x128xf32>,
    %c0_10 = arith.constant 0 : index
    %c0_11 = arith.constant 0 : index
    %12 = vector.load %arg7[%c0_10, %c0_11] : memref<8x128xf32, #tpu.memory_space<vmem>>, vector<8x128xf32>
    %13 = arith.mulf %7, %7 : vector<8x128xf32>
    %14 = arith.addf %12, %13 : vector<8x128xf32>
    %c0_12 = arith.constant 0 : index
    %c0_13 = arith.constant 0 : index
    %15 = vector.load %arg7[%c0_12, %c0_13] : memref<8x128xf32, #tpu.memory_space<vmem>>, vector<8x128xf32>
    tpu.vector_store %arg7[%c0_12, %c0_13], %14 {strides = array<i32>} : memref<8x128xf32, #tpu.memory_space<vmem>>, vector<8x128xf32>,
    %c0_i32_14 = arith.constant 0 : i32
    %16 = arith.cmpi eq, %arg1, %c0_i32_14 : i32
    %17 = arith.extui %16 : i1 to i32
    %c0_i32_15 = arith.constant 0 : i32
    %18 = arith.cmpi ne, %17, %c0_i32_15 : i32
    scf.if %18 {
      %c0_16 = arith.constant 0 : index
      %c0_17 = arith.constant 0 : index
      %19 = vector.load %arg6[%c0_16, %c0_17] : memref<8x128xf32, #tpu.memory_space<vmem>>, vector<8x128xf32>
      %cst = arith.constant dense<0.000000e+00> : vector<8xf32>
      %20 = vector.multi_reduction <add>, %19, %cst [1] : vector<8x128xf32> to vector<8xf32>
      %21 = vector.shape_cast %20 : vector<8xf32> to vector<8x1xf32>
      %22 = math.sqrt %21 : vector<8x1xf32>
      %c0_18 = arith.constant 0 : index
      %c0_19 = arith.constant 0 : index
      %23 = vector.load %arg7[%c0_18, %c0_19] : memref<8x128xf32, #tpu.memory_space<vmem>>, vector<8x128xf32>
      %cst_20 = arith.constant dense<0.000000e+00> : vector<8xf32>
      %24 = vector.multi_reduction <add>, %23, %cst_20 [1] : vector<8x128xf32> to vector<8xf32>
      %25 = vector.shape_cast %24 : vector<8xf32> to vector<8x1xf32>
      %26 = math.sqrt %25 : vector<8x1xf32>
      %cst_21 = arith.constant 5.000000e-01 : f32
      %27 = vector.broadcast %cst_21 : f32 to vector<8x1xf32>
      %28 = arith.addf %27, %22 : vector<8x1xf32>
      %29 = arith.subf %28, %26 : vector<8x1xf32>
      %cst_22 = arith.constant 0.000000e+00 : f32
      %30 = vector.broadcast %cst_22 : f32 to vector<8x1xf32>
      %31 = arith.maximumf %29, %30 : vector<8x1xf32>
      %c0_23 = arith.constant 0 : index
      %c0_24 = arith.constant 0 : index
      %32 = vector.load %arg5[%c0_23, %c0_24] : memref<8x1xf32, #tpu.memory_space<vmem>>, vector<8x1xf32>
      tpu.vector_store %arg5[%c0_23, %c0_24], %31 {strides = array<i32>} : memref<8x1xf32, #tpu.memory_space<vmem>>, vector<8x1xf32>,
    } else {
    }
    return
  }
  func.func @transform_0(%arg0: i32, %arg1: i32) -> (i32, i32) {
    %c0_i32 = arith.constant 0 : i32
    return %arg0, %arg1 : i32, i32
  }
  func.func @transform_1(%arg0: i32, %arg1: i32) -> (i32, i32) {
    %c0_i32 = arith.constant 0 : i32
    return %arg0, %arg1 : i32, i32
  }
  func.func @transform_2(%arg0: i32, %arg1: i32) -> (i32, i32) {
    %c0_i32 = arith.constant 0 : i32
    return %arg0, %arg1 : i32, i32
  }
  func.func @transform_3(%arg0: i32, %arg1: i32) -> (i32, i32) {
    %c0_i32 = arith.constant 0 : i32
    %c0_i32_0 = arith.constant 0 : i32
    return %arg0, %c0_i32 : i32, i32
  }
}

</mosaic_0001>

<llo_original>
// kernel: tpu_custom_call.1
$region0: #{tpu_custom_call.1}
  #allocation0 [shape = 'u32[]', space=smem, size = 0x4, offset = 0x4, fixed_abs, tag = 'smem constant byte address 0x4 - core index']
  #allocation1 [shape = 'u32[144,128]{1,0:T(1,128)}', space=vmem, size = 0x12000, scoped, tag = 'internal scratch']
  #allocation2 [shape = 'f32[8,128]{1,0:T(8,128)}', space=vmem, size = 0x1000, scoped, tag = 'scratch operand']
  #allocation3 [shape = 'f32[8,128]{1,0:T(8,128)}', space=vmem, size = 0x1000, scoped, tag = 'scratch operand']
  %s0 = inlined_call_operand.hbm [shape: f32[8,128], index: 0, kind: input, shape index: {}]
  %s1 = inlined_call_operand.hbm [shape: f32[8,128], index: 1, kind: input, shape index: {}]
  %s2 = inlined_call_operand.hbm [shape: f32[8,128], index: 2, kind: input, shape index: {}]
  %s3 = inlined_call_operand.vmem [shape: f32[8,1], index: 3, kind: output, shape index: {}]
  %s4 = sld [smem:[#allocation0]]
  $region42: #{tpu_custom_call.1} parent=0
    _
  %s6 = ssub.s32 1, %s4
  %s7 = scalar_select 0, %s6, %s4
  $region1: #{tpu_custom_call.1} parent=0
    #allocation4 [shape = 'u8[4096]{0}', space=vmem, size = 0x1000, scoped, tag = 'input window, operand 0, single buffered']
    #allocation5 [shape = 's32[1]{0}', space=sflag, size = 0x4, scoped, tag = 'scoped memory for tpu_custom_call.1']
    #allocation6 [shape = 'u8[4096]{0}', space=vmem, size = 0x1000, scoped, tag = 'input window, operand 1, single buffered']
    #allocation7 [shape = 's32[1]{0}', space=sflag, size = 0x4, scoped, tag = 'scoped memory for tpu_custom_call.1']
    #allocation8 [shape = 'u8[4096]{0}', space=vmem, size = 0x1000, scoped, tag = 'input window, operand 2, single buffered']
    %8 = vsyncpa [#allocation5], 0
    %9 = vsyncpa [#allocation7], 0
    // Predicated region
    $region2: #{tpu_custom_call.1} parent=1 // pred_check
      _
    $region3: #{tpu_custom_call.1} parent=1 // pred_check_branch
      %11 = sbr.rel (0) target = $region5
    $region4: #{tpu_custom_call.1} parent=1 // pred_region
      %s13 = ssub.s32 128, 128
      %14 = vsyncadd [#allocation5], %s13
      %s16 = sshll.u32 [#allocation4], 4
      %s17 = int_to_ptr.vmem [resolvable:$true] %s16
      %19 = dma.hbm_to_vmem [thread:$0]  %s0, 128, %s17, [#allocation5]
    $region5: #{tpu_custom_call.1} parent=1 // pred_fallthru
      _
    // Predicated region
    $region6: #{tpu_custom_call.1} parent=1 // pred_check
      _
    $region7: #{tpu_custom_call.1} parent=1 // pred_check_branch
      %21 = sbr.rel (0) target = $region9
    $region8: #{tpu_custom_call.1} parent=1 // pred_region
      %s23 = ssub.s32 128, 128
      %24 = vsyncadd [#allocation7], %s23
      %s26 = sshll.u32 [#allocation6], 4
      %s27 = int_to_ptr.vmem [resolvable:$true] %s26
      %29 = dma.hbm_to_vmem [thread:$0]  %s1, 128, %s27, [#allocation7]
    $region9: #{tpu_custom_call.1} parent=1 // pred_fallthru
      _
    // Predicated region
    $region10: #{tpu_custom_call.1} parent=1 // pred_check
      _
    $region11: #{tpu_custom_call.1} parent=1 // pred_check_branch
      %31 = sbr.rel (0) target = $region13
    $region12: #{tpu_custom_call.1} parent=1 // pred_region
      %s33 = ssub.s32 128, 128
      %34 = vsyncadd [#allocation7], %s33
      %s36 = sshll.u32 [#allocation8], 4
      %s37 = int_to_ptr.vmem [resolvable:$true] %s36
      %39 = dma.hbm_to_vmem [thread:$0]  %s2, 128, %s37, [#allocation7]
    $region13: #{tpu_custom_call.1} parent=1 // pred_fallthru
      _
    // Predicated region
    $region14: #{tpu_custom_call.1} parent=1 // pred_check
      _
    $region15: #{tpu_custom_call.1} parent=1 // pred_check_branch
      %41 = sbr.rel (0) target = $region17
    $region16: #{tpu_custom_call.1} parent=1 // pred_region
      %42 = dma.done [#allocation5], 128
    $region17: #{tpu_custom_call.1} parent=1 // pred_fallthru
      _
    // Predicated region
    $region18: #{tpu_custom_call.1} parent=1 // pred_check
      _
    $region19: #{tpu_custom_call.1} parent=1 // pred_check_branch
      %44 = sbr.rel (0) target = $region21
    $region20: #{tpu_custom_call.1} parent=1 // pred_region
      %45 = dma.done [#allocation7], 128
    $region21: #{tpu_custom_call.1} parent=1 // pred_fallthru
      _
    // Predicated region
    $region22: #{tpu_custom_call.1} parent=1 // pred_check
      _
    $region23: #{tpu_custom_call.1} parent=1 // pred_check_branch
      %47 = sbr.rel (0) target = $region25
    $region24: #{tpu_custom_call.1} parent=1 // pred_region
      %48 = dma.done [#allocation7], 128
    $region25: #{tpu_custom_call.1} parent=1 // pred_fallthru
      _
    %p49 = scmp.eq.s32.totalorder 0, 0
    // Predicated region
    $region26: #{tpu_custom_call.1} parent=1 // pred_check
      %p50 = pneg %p49
    $region27: #{tpu_custom_call.1} parent=1 // pred_check_branch
      %52 = sbr.rel (%p50) target = $region29
    $region28: #{tpu_custom_call.1} parent=1 // pred_region
      %53 = vst [vmem:[#allocation2] sm:$0xff] 0.0
      %54 = vst [vmem:[#allocation3] sm:$0xff] 0.0
    $region29: #{tpu_custom_call.1} parent=1 // pred_fallthru
      _
    %v55 = vld [vmem:[#allocation4] sm:$0xff]
    %v56 = vld [vmem:[#allocation6] sm:$0xff]
    %v57 = vsub.f32 %v55, %v56
    %v58 = vld [vmem:[#allocation8] sm:$0xff]
    %v59 = vsub.f32 %v55, %v58
    %v60 = vld [vmem:[#allocation2] sm:$0xff]
    %v61 = vmul.f32 %v57, %v57
    %v62 = vadd.f32 %v60, %v61
    %63 = vst [vmem:[#allocation2] sm:$0xff] %v62
    %v64 = vld [vmem:[#allocation3] sm:$0xff]
    %v65 = vmul.f32 %v59, %v59
    %v66 = vadd.f32 %v64, %v65
    %67 = vst [vmem:[#allocation3] sm:$0xff] %v66
    // Predicated region
    $region30: #{tpu_custom_call.1} parent=1 // pred_check
      %p68 = pneg %p49
    $region31: #{tpu_custom_call.1} parent=1 // pred_check_branch
      %70 = sbr.rel (%p68) target = $region33
    $region32: #{tpu_custom_call.1} parent=1 // pred_region
      %v71 = vld [vmem:[#allocation2] sm:$0xff]
      %72 = vadd.xlane.f32.xlu0 %v71
      %v73 = vpop.xlane.xlu0 %72
      %v74 = vrsqrt.pop %v73
      %v75 = vmul.f32 %v73, %v74
      %vm76 = vcmp.eq.f32.partialorder %v73, inf
      %v77 = vsel %vm76, %v73, %v75
      %vm78 = vcmp.eq.f32.partialorder %v73, 0.0
      %v79 = vand.u32 %v73, 2147483648
      %v80 = vsel %vm78, %v79, %v77
      %v81 = vld [vmem:[#allocation3] sm:$0xff]
      %82 = vadd.xlane.f32.xlu0 %v81
      %v83 = vpop.xlane.xlu0 %82
      %v84 = vrsqrt.pop %v83
      %v85 = vmul.f32 %v83, %v84
      %vm86 = vcmp.eq.f32.partialorder %v83, inf
      %v87 = vsel %vm86, %v83, %v85
      %vm88 = vcmp.eq.f32.partialorder %v83, 0.0
      %v89 = vand.u32 %v83, 2147483648
      %v90 = vsel %vm88, %v89, %v87
      %v91 = vadd.f32 %v80, 0.5
      %v92 = vsub.f32 %v91, %v90
      %v93 = vmax.f32 %v92, 0.0
      %vm94 = vcmask 7168
      %95 = vst.msk [vmem:[%s3] sm:$0xff] %vm94, %v93
    $region33: #{tpu_custom_call.1} parent=1 // pred_fallthru
      _
    // Predicated region
    $region34: #{tpu_custom_call.1} parent=1 // pred_check
      _
    $region35: #{tpu_custom_call.1} parent=1 // pred_check_branch
      %97 = sbr.rel (0) target = $region37
    $region36: #{tpu_custom_call.1} parent=1 // pred_region
      _
    $region37: #{tpu_custom_call.1} parent=1 // pred_fallthru
      _
    // Predicated region
    $region38: #{tpu_custom_call.1} parent=1 // pred_check
      _
    $region39: #{tpu_custom_call.1} parent=1 // pred_check_branch
      %99 = sbr.rel (0) target = $region41
    $region40: #{tpu_custom_call.1} parent=1 // pred_region
      _
    $region41: #{tpu_custom_call.1} parent=1 // pred_fallthru
      _
    %100 = vsyncpa [#allocation5], 1
    %101 = vsyncpa [#allocation7], 1

</llo_original>
